<compile_context>
chip_gen: v6e
topology: v6e:2x2x1
jax: 0.10.0
libtpu: 0.0.40
codegen_flags: <defaults>
</compile_context>

<pallas_src>
import functools

import jax
import jax.numpy as jnp
from jax.experimental import pallas as pl
from jax.experimental.pallas import tpu as pltpu


def _hybrid_loss_kernel(*refs, spatial_tv, spectral_tv, tc):
    """One (batch b, C-tile k) grid step.

    refs = (y_ref, gt_ref, l1_ref[, h_ref, w_ref][, c_ref, carry_ref])
      y_ref, gt_ref : (1, tc, H, W) input tiles (any float dtype)
      l1_ref        : (1, H,   W)  running sum over C of |y - gt|
      h_ref         : (1, H-1, W)  running sum over C of (d_H y)^2
      w_ref         : (1, H, W-1)  running sum over C of (d_W y)^2
      c_ref         : (1, H,   W)  running sum over C-pairs of (d_C y)^2
      carry_ref     : (1, H,   W)  last channel of previous C tile (scratch)
    """
    y_ref, gt_ref = refs[0], refs[1]
    idx = 2
    l1_ref = refs[idx]; idx += 1
    if spatial_tv:
        h_ref = refs[idx]; w_ref = refs[idx + 1]; idx += 2
    if spectral_tv:
        c_ref = refs[idx]; carry_ref = refs[idx + 1]; idx += 2

    k = pl.program_id(1)

    # Zero the per-sample accumulators on the first C tile of each b.
    @pl.when(k == 0)
    def _init():
        l1_ref[...] = jnp.zeros_like(l1_ref)
        if spatial_tv:
            h_ref[...] = jnp.zeros_like(h_ref)
            w_ref[...] = jnp.zeros_like(w_ref)
        if spectral_tv:
            c_ref[...] = jnp.zeros_like(c_ref)

    y = y_ref[0].astype(jnp.float32)       # (tc, H, W)
    gt = gt_ref[0].astype(jnp.float32)

    # L1 fidelity term (plane accumulator; the scalar mean is taken in the wrapper).
    l1_ref[...] += jnp.sum(jnp.abs(y - gt), axis=0, keepdims=True)

    if spatial_tv:
        dh = y[:, 1:, :] - y[:, :-1, :]            # (tc, H-1, W)
        h_ref[...] += jnp.sum(dh * dh, axis=0, keepdims=True)
        dw = y[:, :, 1:] - y[:, :, :-1]            # (tc, H, W-1)
        w_ref[...] += jnp.sum(dw * dw, axis=0, keepdims=True)

    if spectral_tv:
        if tc > 1:
            dc = y[1:] - y[:-1]                    # (tc-1, H, W), within-tile diffs
            c_ref[...] += jnp.sum(dc * dc, axis=0, keepdims=True)

        @pl.when(k > 0)
        def _c_boundary():
            # Difference across the C-tile boundary (carried last channel).
            db = y[0:1] - carry_ref[...]
            c_ref[...] += db * db

        # Save the last channel of this tile for the next tile's boundary term.
        carry_ref[...] = y[tc - 1:tc]


def _pick_c_tile(C, H, W, itemsize, budget_bytes=2 * 1024 * 1024):
    """Largest divisor of C whose (tc, H, W) input tile stays under the budget
    (keeps 2 inputs x 2 pipeline buffers well inside VMEM on v5e/v6e/v7x)."""
    # TODO(synk): if even a single-channel (1, H, W) slab exceeds the budget,
    # spatial halo-tiling over H/W would be needed; we fall back to tc = 1.
    best = 1
    for d in range(1, C + 1):
        if C % d == 0 and d * H * W * itemsize <= budget_bytes:
            best = d
    return best


@functools.partial(jax.jit,
                   static_argnames=("lamd", "spatial_tv", "spectral_tv", "c_tile"))
def hybrid_loss(y, gt, lamd=0.1, spatial_tv=False, spectral_tv=False, c_tile=None):
    del lamd  # stored by the PyTorch module but unused in forward
    B, C, H, W = y.shape
    if c_tile is None:
        c_tile = _pick_c_tile(C, H, W, jnp.dtype(y.dtype).itemsize)
    tc = int(c_tile)
    assert C % tc == 0, "c_tile must divide C"
    nc = C // tc

    in_spec = pl.BlockSpec((1, tc, H, W), lambda b, k: (b, k, 0, 0))
    plane_spec = pl.BlockSpec((1, H, W), lambda b, k: (b, 0, 0))

    out_shapes = [jax.ShapeDtypeStruct((B, H, W), jnp.float32)]
    out_specs = [plane_spec]
    if spatial_tv:
        out_shapes += [jax.ShapeDtypeStruct((B, H - 1, W), jnp.float32),
                       jax.ShapeDtypeStruct((B, H, W - 1), jnp.float32)]
        out_specs += [pl.BlockSpec((1, H - 1, W), lambda b, k: (b, 0, 0)),
                      pl.BlockSpec((1, H, W - 1), lambda b, k: (b, 0, 0))]
    if spectral_tv:
        out_shapes.append(jax.ShapeDtypeStruct((B, H, W), jnp.float32))
        out_specs.append(plane_spec)

    scratch_shapes = []
    if spectral_tv:
        scratch_shapes.append(pltpu.VMEM((1, H, W), jnp.float32))  # C-tile carry

    kernel = functools.partial(_hybrid_loss_kernel, spatial_tv=spatial_tv,
                               spectral_tv=spectral_tv, tc=tc)

    outs = pl.pallas_call(
        kernel,
        out_shape=tuple(out_shapes),
        grid=(B, nc),
        in_specs=[in_spec, in_spec],
        out_specs=tuple(out_specs),
        scratch_shapes=tuple(scratch_shapes),
        compiler_params=pltpu.CompilerParams(
            dimension_semantics=("parallel", "arbitrary")),
    )(y, gt)

    # Tiny final reductions + PyTorch normalizations (fused into the same jit).
    idx = 0
    total = jnp.sum(outs[idx]) / (B * C * H * W); idx += 1     # nn.L1Loss (mean)
    if spatial_tv:
        h_tv = jnp.sum(outs[idx]); w_tv = jnp.sum(outs[idx + 1]); idx += 2
        count_h = C * (H - 1) * W
        count_w = C * H * (W - 1)
        total = total + 0.001 * (h_tv / count_h + w_tv / count_w) / B
    if spectral_tv:
        c_tv = jnp.sum(outs[idx]); idx += 1
        count_c = (C - 1) * H * W
        total = total + 0.001 * 2.0 * (c_tv / count_c) / B
    return total


def _reference_loss(y, gt, spatial_tv, spectral_tv):
    """Pure-JAX reference mirroring the PyTorch code."""
    B, C, H, W = y.shape
    total = jnp.mean(jnp.abs(y - gt))
    if spatial_tv:
        h_tv = jnp.sum((y[:, :, 1:, :] - y[:, :, :-1, :]) ** 2)
        w_tv = jnp.sum((y[:, :, :, 1:] - y[:, :, :, :-1]) ** 2)
        total = total + 0.001 * (h_tv / (C * (H - 1) * W)
                                 + w_tv / (C * H * (W - 1))) / B
    if spectral_tv:
        c_tv = jnp.sum((y[:, 1:, :, :] - y[:, :-1, :, :]) ** 2)
        total = total + 0.001 * 2.0 * (c_tv / ((C - 1) * H * W)) / B
    return total


if __name__ == "__main__":
    key = jax.random.PRNGKey(0)
    k1, k2 = jax.random.split(key)
    B, C, H, W = 2, 4, 16, 16
    y = jax.random.normal(k1, (B, C, H, W), dtype=jnp.float32)
    gt = jax.random.normal(k2, (B, C, H, W), dtype=jnp.float32)

    cases = [
        dict(spatial_tv=False, spectral_tv=False, c_tile=None),  # default: pure L1
        dict(spatial_tv=True,  spectral_tv=False, c_tile=None),
        dict(spatial_tv=False, spectral_tv=True,  c_tile=2),
        dict(spatial_tv=True,  spectral_tv=True,  c_tile=None),  # tc = C, no carry
        dict(spatial_tv=True,  spectral_tv=True,  c_tile=2),     # exercises C carry
        dict(spatial_tv=True,  spectral_tv=True,  c_tile=1),     # boundary-only C TV
    ]
    for cfg in cases:
        out = jax.block_until_ready(hybrid_loss(y, gt, lamd=0.1, **cfg))
        ref = _reference_loss(y, gt, cfg["spatial_tv"], cfg["spectral_tv"])
        assert jnp.allclose(out, ref, rtol=1e-4, atol=1e-6), (cfg, out, ref)

    print("KERNEL_OK")
</pallas_src>

<mosaic_0001>
module attributes {stable_mosaic.version = 11 : i64} {
  func.func @_hybrid_loss_kernel(%arg0: i32, %arg1: i32, %arg2: memref<1x4x16x16xf32, #tpu.memory_space<vmem>>, %arg3: memref<1x4x16x16xf32, #tpu.memory_space<vmem>>, %arg4: memref<1x16x16xf32, #tpu.memory_space<vmem>>) attributes {dimension_semantics = [#tpu.dimension_semantics<parallel>, #tpu.dimension_semantics<arbitrary>], iteration_bounds = array<i64: 2, 1>, scalar_prefetch = 0 : i64, scratch_operands = 0 : i64, tpu.core_type = #tpu.core_type<tc>, window_params = [{transform_indices = @transform_0, window_bounds = array<i64: 1, 4, 16, 16>}, {transform_indices = @transform_1, window_bounds = array<i64: 1, 4, 16, 16>}, {transform_indices = @transform_2, window_bounds = array<i64: 1, 16, 16>}]} {
    %c0_i32 = arith.constant 0 : i32
    %0 = arith.cmpi eq, %arg1, %c0_i32 : i32
    %1 = arith.extui %0 : i1 to i32
    %c0_i32_0 = arith.constant 0 : i32
    %2 = arith.cmpi ne, %1, %c0_i32_0 : i32
    scf.if %2 {
      %cst_14 = arith.constant 0.000000e+00 : f32
      %14 = vector.broadcast %cst_14 : f32 to vector<1x16x16xf32>
      %c0_15 = arith.constant 0 : index
      %c0_16 = arith.constant 0 : index
      %c0_17 = arith.constant 0 : index
      %15 = vector.load %arg4[%c0_15, %c0_16, %c0_17] : memref<1x16x16xf32, #tpu.memory_space<vmem>>, vector<1x16x16xf32>
      tpu.vector_store %arg4[%c0_15, %c0_16, %c0_17], %14 {strides = array<i32>} : memref<1x16x16xf32, #tpu.memory_space<vmem>>, vector<1x16x16xf32>,
    } else {
    }
    %c0 = arith.constant 0 : index
    %c0_1 = arith.constant 0 : index
    %c0_2 = arith.constant 0 : index
    %c0_3 = arith.constant 0 : index
    %3 = vector.load %arg2[%c0, %c0_1, %c0_2, %c0_3] : memref<1x4x16x16xf32, #tpu.memory_space<vmem>>, vector<1x4x16x16xf32>
    %4 = vector.shape_cast %3 : vector<1x4x16x16xf32> to vector<4x16x16xf32>
    %c0_4 = arith.constant 0 : index
    %c0_5 = arith.constant 0 : index
    %c0_6 = arith.constant 0 : index
    %c0_7 = arith.constant 0 : index
    %5 = vector.load %arg3[%c0_4, %c0_5, %c0_6, %c0_7] : memref<1x4x16x16xf32, #tpu.memory_space<vmem>>, vector<1x4x16x16xf32>
    %6 = vector.shape_cast %5 : vector<1x4x16x16xf32> to vector<4x16x16xf32>
    %c0_8 = arith.constant 0 : index
    %c0_9 = arith.constant 0 : index
    %c0_10 = arith.constant 0 : index
    %7 = vector.load %arg4[%c0_8, %c0_9, %c0_10] : memref<1x16x16xf32, #tpu.memory_space<vmem>>, vector<1x16x16xf32>
    %8 = arith.subf %4, %6 : vector<4x16x16xf32>
    %9 = math.absf %8 : vector<4x16x16xf32>
    %cst = arith.constant dense<0.000000e+00> : vector<16x16xf32>
    %10 = vector.multi_reduction <add>, %9, %cst [0] : vector<4x16x16xf32> to vector<16x16xf32>
    %11 = vector.shape_cast %10 : vector<16x16xf32> to vector<1x16x16xf32>
    %12 = arith.addf %7, %11 : vector<1x16x16xf32>
    %c0_11 = arith.constant 0 : index
    %c0_12 = arith.constant 0 : index
    %c0_13 = arith.constant 0 : index
    %13 = vector.load %arg4[%c0_11, %c0_12, %c0_13] : memref<1x16x16xf32, #tpu.memory_space<vmem>>, vector<1x16x16xf32>
    tpu.vector_store %arg4[%c0_11, %c0_12, %c0_13], %12 {strides = array<i32>} : memref<1x16x16xf32, #tpu.memory_space<vmem>>, vector<1x16x16xf32>,
    return
  }
  func.func @transform_0(%arg0: i32, %arg1: i32) -> (i32, i32, i32, i32) {
    %c0_i32 = arith.constant 0 : i32
    %c0_i32_0 = arith.constant 0 : i32
    %c0_i32_1 = arith.constant 0 : i32
    return %arg0, %arg1, %c0_i32, %c0_i32_0 : i32, i32, i32, i32
  }
  func.func @transform_1(%arg0: i32, %arg1: i32) -> (i32, i32, i32, i32) {
    %c0_i32 = arith.constant 0 : i32
    %c0_i32_0 = arith.constant 0 : i32
    %c0_i32_1 = arith.constant 0 : i32
    return %arg0, %arg1, %c0_i32, %c0_i32_0 : i32, i32, i32, i32
  }
  func.func @transform_2(%arg0: i32, %arg1: i32) -> (i32, i32, i32) {
    %c0_i32 = arith.constant 0 : i32
    %c0_i32_0 = arith.constant 0 : i32
    %c0_i32_1 = arith.constant 0 : i32
    return %arg0, %c0_i32, %c0_i32_0 : i32, i32, i32
  }
}

</mosaic_0001>

<llo_original>
// kernel: hybrid_loss.1
$region0: #{hybrid_loss.1}
  #allocation0 [shape = 'u32[]', space=smem, size = 0x4, offset = 0x4, fixed_abs, tag = 'smem constant byte address 0x4 - core index']
  #allocation1 [shape = 'u32[144,128]{1,0:T(1,128)}', space=vmem, size = 0x12000, scoped, tag = 'internal scratch']
  %s0 = inlined_call_operand.hbm [shape: f32[2,4,16,16], index: 0, kind: input, shape index: {}]
  %s1 = inlined_call_operand.hbm [shape: f32[2,4,16,16], index: 1, kind: input, shape index: {}]
  %s2 = inlined_call_operand.vmem [shape: f32[2,16,16], index: 2, kind: output, shape index: {}]
  %s3 = sld [smem:[#allocation0]]
  $region53: #{hybrid_loss.1} parent=0
    _
  %s5 = ssub.s32 1, %s3
  %s6 = scalar_select 0, %s5, %s3
  $region1: #{hybrid_loss.1} parent=0
    #allocation2 [shape = 'u8[65536]{0}', space=vmem, size = 0x10000, scoped, tag = 'input window, operand 0']
    #allocation3 [shape = 's32[2]{0}', space=sflag, size = 0x8, scoped, tag = 'scoped memory for hybrid_loss.1']
    #allocation4 [shape = 'u8[65536]{0}', space=vmem, size = 0x10000, scoped, tag = 'input window, operand 1']
    #allocation5 [shape = 's32[2]{0}', space=sflag, size = 0x8, scoped, tag = 'scoped memory for hybrid_loss.1']
    %7 = vsyncpa [#allocation3], 0
    %s8 = scalar_lea.sflag [#allocation3], 1
    %9 = vsyncpa %s8, 0
    %10 = vsyncpa [#allocation5], 0
    %s11 = scalar_lea.sflag [#allocation5], 1
    %12 = vsyncpa %s11, 0
    loop: start=0, step=1, limit=4
    $region2: #{hybrid_loss.1} parent=1 // loop_pre_header
      _
    $region3: #{hybrid_loss.1} parent=1 // loop_header
      %s14 = sphi 0, %s18
      %p15 = scmp.ge.s32.totalorder %s14, 4
      %s21 = sphi 0, %s33
      %s22 = sphi 0, %s29
      %s23 = sphi 0, %s21
      %s24 = sphi 0, %s22
      %s25 = sphi 0, %s23
      %s26 = sphi 0, %s24
      %s38 = sphi 0, %s40
      %s41 = sphi 0, %s38
      %s42 = sphi 0, %s41
      %s58 = sphi 0, %s42
      %s66 = sphi 0, %s68
      %s69 = sphi 0, %s66
      %s70 = sphi 0, %s69
      %s86 = sphi 0, %s70
      %s92 = sphi 0, %s94
      %s95 = sphi 0, %s92
      %s96 = sphi 0, %s95
      %s112 = sphi 0, %s96
    $region4: #{hybrid_loss.1} parent=1 // loop_header_branch
      %17 = sbr.rel (%p15) target = $region8
    $region5: #{hybrid_loss.1} parent=1 // loop_body
      %s19 = ssub.s32 %s14, 1
      %s20 = ssub.s32 %s14, 2
      %s27 = sadd.s32 1, %s22
      %p28 = scmp.ge.s32.totalorder %s27, 1
      %s29 = scalar_select %p28, 0, %s27
      %s30 = sadd.s32 1, %s21
      %s31 = scalar_select %p28, %s30, %s21
      %p32 = scmp.ge.s32.totalorder %s31, 2
      %s33 = scalar_select %p32, 0, %s31
      %s34 = ssub.s32 %s21, %s33
      %s35 = ssub.s32 %s22, %s29
      %s36 = sor.u32 %s34, %s35
      %p37 = scmp.eq.s32.totalorder %s36, 0
      %s39 = sadd.s32 %s38, 1
      %s40 = scalar_select %p37, %s38, %s39
      %p43 = pneg %p37
      %p44 = scmp.eq.s32.totalorder %s14, 1
      %p45 = por %p43, %p44
      %p46 = scmp.ne.s32.totalorder %s38, %s41
      %p47 = scmp.eq.s32.totalorder %s14, 0
      %p48 = por %p46, %p47
      %p49 = scmp.ne.s32.totalorder %s38, %s41
      %p50 = scmp.eq.s32.totalorder %s19, 1
      %p51 = por %p49, %p50
      %p52 = scmp.ne.s32.totalorder %s41, %s42
      %p53 = scmp.eq.s32.totalorder %s19, 0
      %p54 = por %p52, %p53
      %p55 = scmp.ne.s32.totalorder %s41, %s42
      %p56 = scmp.eq.s32.totalorder %s20, 1
      %p57 = por %p55, %p56
      %p59 = scmp.ne.s32.totalorder %s42, %s58
      %p60 = scmp.eq.s32.totalorder %s20, 0
      %p61 = por %p59, %p60
      %s62 = ssub.s32 %s21, %s33
      %s63 = ssub.s32 %s22, %s29
      %s64 = sor.u32 %s62, %s63
      %p65 = scmp.eq.s32.totalorder %s64, 0
      %s67 = sadd.s32 %s66, 1
      %s68 = scalar_select %p65, %s66, %s67
      %p71 = pneg %p65
      %p72 = scmp.eq.s32.totalorder %s14, 1
      %p73 = por %p71, %p72
      %p74 = scmp.ne.s32.totalorder %s66, %s69
      %p75 = scmp.eq.s32.totalorder %s14, 0
      %p76 = por %p74, %p75
      %p77 = scmp.ne.s32.totalorder %s66, %s69
      %p78 = scmp.eq.s32.totalorder %s19, 1
      %p79 = por %p77, %p78
      %p80 = scmp.ne.s32.totalorder %s69, %s70
      %p81 = scmp.eq.s32.totalorder %s19, 0
      %p82 = por %p80, %p81
      %p83 = scmp.ne.s32.totalorder %s69, %s70
      %p84 = scmp.eq.s32.totalorder %s20, 1
      %p85 = por %p83, %p84
      %p87 = scmp.ne.s32.totalorder %s70, %s86
      %p88 = scmp.eq.s32.totalorder %s20, 0
      %p89 = por %p87, %p88
      %s90 = ssub.s32 %s21, %s33
      %p91 = scmp.eq.s32.totalorder %s90, 0
      %s93 = sadd.s32 %s92, 1
      %s94 = scalar_select %p91, %s92, %s93
      %p97 = pneg %p91
      %p98 = scmp.eq.s32.totalorder %s14, 1
      %p99 = por %p97, %p98
      %p100 = scmp.ne.s32.totalorder %s92, %s95
      %p101 = scmp.eq.s32.totalorder %s14, 0
      %p102 = por %p100, %p101
      %p103 = scmp.ne.s32.totalorder %s92, %s95
      %p104 = scmp.eq.s32.totalorder %s19, 1
      %p105 = por %p103, %p104
      %p106 = scmp.ne.s32.totalorder %s95, %s96
      %p107 = scmp.eq.s32.totalorder %s19, 0
      %p108 = por %p106, %p107
      %p109 = scmp.ne.s32.totalorder %s95, %s96
      %p110 = scmp.eq.s32.totalorder %s20, 1
      %p111 = por %p109, %p110
      %p113 = scmp.ne.s32.totalorder %s96, %s112
      %p114 = scmp.eq.s32.totalorder %s20, 0
      %p115 = por %p113, %p114
      %p116 = scmp.le.s32.totalorder 1, %s14
      %p117 = scmp.lt.s32.totalorder %s14, 3
      %p118 = pnand %p116, %p117
      %p119 = pneg %p118
      // Predicated region
      $region9: #{hybrid_loss.1} parent=5 // pred_check
        _
      $region10: #{hybrid_loss.1} parent=5 // pred_check_branch
        %121 = sbr.rel (%p118) target = $region12
      $region11: #{hybrid_loss.1} parent=5 // pred_region
        %s122 = ssub.s32 %s14, 1
      $region12: #{hybrid_loss.1} parent=5 // pred_fallthru
        _
      %p123 = scmp.lt.s32.totalorder %s14, 2
      // Predicated region
      $region13: #{hybrid_loss.1} parent=5 // pred_check
        %p124 = pneg %p123
      $region14: #{hybrid_loss.1} parent=5 // pred_check_branch
        %126 = sbr.rel (%p124) target = $region16
      $region15: #{hybrid_loss.1} parent=5 // pred_region
        // Predicated region
        $region17: #{hybrid_loss.1} parent=15 // pred_check
          %p127 = pneg %p48
        $region18: #{hybrid_loss.1} parent=15 // pred_check_branch
          %129 = sbr.rel (%p127) target = $region20
        $region19: #{hybrid_loss.1} parent=15 // pred_region
          %s130 = sand.u32 %s38, 1
          %s131 = scalar_lea.sflag [#allocation3], %s130
          %s132 = sand.u32 %s38, 1
          %s133 = smul.addr %s132, 64
          %s134 = scalar_lea.vmem [#allocation2], %s133
          %s135 = smul.u32 4, %s22
          %s137 = ssub.s32 1024, 1024
          %138 = vsyncadd %s131, %s137
          %s139 = smul.addr %s135, 2
          %s140 = smul.addr %s21, 8
          %s141 = sadd.s32 %s139, %s140
          %s142 = smul.addr %s141, 128
          %s143 = scalar_lea.hbm %s0, %s142
          %s144 = sshll.u32 %s134, 4
          %s145 = int_to_ptr.vmem [resolvable:$true] %s144
          %150 = dma.hbm_to_vmem [thread:$0]  %s143, 1024, %s145, %s131, 128, 128, 8
        $region20: #{hybrid_loss.1} parent=15 // pred_fallthru
          _
        // Predicated region
        $region21: #{hybrid_loss.1} parent=15 // pred_check
          %p151 = pneg %p76
        $region22: #{hybrid_loss.1} parent=15 // pred_check_branch
          %153 = sbr.rel (%p151) target = $region24
        $region23: #{hybrid_loss.1} parent=15 // pred_region
          %s154 = sand.u32 %s66, 1
          %s155 = scalar_lea.sflag [#allocation5], %s154
          %s156 = sand.u32 %s66, 1
          %s157 = smul.addr %s156, 64
          %s158 = scalar_lea.vmem [#allocation4], %s157
          %s159 = smul.u32 4, %s22
          %s161 = ssub.s32 1024, 1024
          %162 = vsyncadd %s155, %s161
          %s163 = smul.addr %s159, 2
          %s164 = smul.addr %s21, 8
          %s165 = sadd.s32 %s163, %s164
          %s166 = smul.addr %s165, 128
          %s167 = scalar_lea.hbm %s1, %s166
          %s168 = sshll.u32 %s158, 4
          %s169 = int_to_ptr.vmem [resolvable:$true] %s168
          %174 = dma.hbm_to_vmem [thread:$0]  %s167, 1024, %s169, %s155, 128, 128, 8
        $region24: #{hybrid_loss.1} parent=15 // pred_fallthru
          _
      $region16: #{hybrid_loss.1} parent=5 // pred_fallthru
        _
      %p175 = scmp.le.s32.totalorder 1, %s14
      %p176 = scmp.lt.s32.totalorder %s14, 3
      %p177 = pnand %p175, %p176
      %p178 = pneg %p177
      // Predicated region
      $region25: #{hybrid_loss.1} parent=5 // pred_check
        _
      $region26: #{hybrid_loss.1} parent=5 // pred_check_branch
        %180 = sbr.rel (%p177) target = $region28
      $region27: #{hybrid_loss.1} parent=5 // pred_region
        %s181 = ssub.s32 %s14, 1
        %s182 = sand.u32 %s41, 1
        %s183 = scalar_lea.sflag [#allocation3], %s182
        %s184 = sand.u32 %s41, 1
        %s185 = smul.addr %s184, 64
        %s186 = scalar_lea.vmem [#allocation2], %s185
        // Predicated region
        $region29: #{hybrid_loss.1} parent=27 // pred_check
          %p187 = pneg %p54
        $region30: #{hybrid_loss.1} parent=27 // pred_check_branch
          %189 = sbr.rel (%p187) target = $region32
        $region31: #{hybrid_loss.1} parent=27 // pred_region
          %190 = dma.done %s183, 1024
        $region32: #{hybrid_loss.1} parent=27 // pred_fallthru
          _
        %s191 = sand.u32 %s69, 1
        %s192 = scalar_lea.sflag [#allocation5], %s191
        %s193 = sand.u32 %s69, 1
        %s194 = smul.addr %s193, 64
        %s195 = scalar_lea.vmem [#allocation4], %s194
        // Predicated region
        $region33: #{hybrid_loss.1} parent=27 // pred_check
          %p196 = pneg %p82
        $region34: #{hybrid_loss.1} parent=27 // pred_check_branch
          %198 = sbr.rel (%p196) target = $region36
        $region35: #{hybrid_loss.1} parent=27 // pred_region
          %199 = dma.done %s192, 1024
        $region36: #{hybrid_loss.1} parent=27 // pred_fallthru
          _
        %s200 = sand.u32 %s41, 1
        %s201 = scalar_lea.sflag [#allocation3], %s200
        %s202 = sand.u32 %s41, 1
        %s203 = smul.addr %s202, 64
        %s204 = scalar_lea.vmem [#allocation2], %s203
        %p205 = pneg %p54
        %p206 = pneg %p51
        %s207 = sand.u32 %s69, 1
        %s208 = scalar_lea.sflag [#allocation5], %s207
        %s209 = sand.u32 %s69, 1
        %s210 = smul.addr %s209, 64
        %s211 = scalar_lea.vmem [#allocation4], %s210
        %p212 = pneg %p82
        %p213 = pneg %p79
        %p214 = pneg %p108
        %p215 = pneg %p105
        %p216 = scmp.lt.s32.totalorder %s23, 1
        %s217 = scalar_select %p216, %s23, 1
        %s218 = smul.addr %s217, 2
        %s219 = smul.addr %s218, 8
        %s220 = scalar_lea.vmem %s2, %s219
        %s221 = smul.u32 4, %s24
        %s222 = smul.u32 4, %s24
        %p223 = scmp.lt.s32.totalorder %s23, 1
        %s224 = scalar_select %p223, %s23, 1
        %s225 = smul.addr %s224, 2
        %s226 = smul.addr %s225, 8
        %s227 = scalar_lea.vmem %s2, %s226
        %p228 = scmp.eq.s32.totalorder %s24, 0
        // Predicated region
        $region37: #{hybrid_loss.1} parent=27 // pred_check
          %p229 = pneg %p228
        $region38: #{hybrid_loss.1} parent=27 // pred_check_branch
          %231 = sbr.rel (%p229) target = $region40
        $region39: #{hybrid_loss.1} parent=27 // pred_region
          %vm232 = vcmask 130048
          %233 = vst.msk [vmem:[%s227] sm:$0xff] %vm232, 0.0
          %234 = vst.msk [vmem:[%s227 + $0x8] sm:$0xff] %vm232, 0.0
        $region40: #{hybrid_loss.1} parent=27 // pred_fallthru
          _
        %v235 = vld [vmem:[%s186] sm:$0xff]
        %v236 = vld [vmem:[%s186 + $0x8] sm:$0xff]
        %v237 = vld [vmem:[%s186 + $0x10] sm:$0xff]
        %v238 = vld [vmem:[%s186 + $0x18] sm:$0xff]
        %v239 = vld [vmem:[%s186 + $0x20] sm:$0xff]
        %v240 = vld [vmem:[%s186 + $0x28] sm:$0xff]
        %v241 = vld [vmem:[%s186 + $0x30] sm:$0xff]
        %v242 = vld [vmem:[%s186 + $0x38] sm:$0xff]
        %v243 = vld [vmem:[%s195] sm:$0xff]
        %v244 = vld [vmem:[%s195 + $0x8] sm:$0xff]
        %v245 = vld [vmem:[%s195 + $0x10] sm:$0xff]
        %v246 = vld [vmem:[%s195 + $0x18] sm:$0xff]
        %v247 = vld [vmem:[%s195 + $0x20] sm:$0xff]
        %v248 = vld [vmem:[%s195 + $0x28] sm:$0xff]
        %v249 = vld [vmem:[%s195 + $0x30] sm:$0xff]
        %v250 = vld [vmem:[%s195 + $0x38] sm:$0xff]
        %v251 = vld [vmem:[%s227] sm:$0xff]
        %v252 = vld [vmem:[%s227 + $0x8] sm:$0xff]
        %v253 = vsub.f32 %v235, %v243
        %v254 = vsub.f32 %v236, %v244
        %v255 = vsub.f32 %v237, %v245
        %v256 = vsub.f32 %v238, %v246
        %v257 = vsub.f32 %v239, %v247
        %v258 = vsub.f32 %v240, %v248
        %v259 = vsub.f32 %v241, %v249
        %v260 = vsub.f32 %v242, %v250
        %v261 = vand.u32 2147483647, %v253
        %v262 = vand.u32 2147483647, %v254
        %v263 = vand.u32 2147483647, %v255
        %v264 = vand.u32 2147483647, %v256
        %v265 = vand.u32 2147483647, %v257
        %v266 = vand.u32 2147483647, %v258
        %v267 = vand.u32 2147483647, %v259
        %v268 = vand.u32 2147483647, %v260
        %vm269 = vcmask 130048
        %v270 = vsel %vm269, %v261, 0.0
        %v271 = vsel %vm269, %v263, 0.0
        %v272 = vadd.f32 %v270, %v271
        %v273 = vsel %vm269, %v265, 0.0
        %v274 = vadd.f32 %v272, %v273
        %v275 = vsel %vm269, %v267, 0.0
        %v276 = vadd.f32 %v274, %v275
        %v277 = vsel %vm269, %v262, 0.0
        %v278 = vsel %vm269, %v264, 0.0
        %v279 = vadd.f32 %v277, %v278
        %v280 = vsel %vm269, %v266, 0.0
        %v281 = vadd.f32 %v279, %v280
        %v282 = vsel %vm269, %v268, 0.0
        %v283 = vadd.f32 %v281, %v282
        %v284 = vadd.f32 %v251, %v276
        %v285 = vadd.f32 %v252, %v283
        %286 = vst.msk [vmem:[%s227] sm:$0xff] %vm269, %v284
        %287 = vst.msk [vmem:[%s227 + $0x8] sm:$0xff] %vm269, %v285
        %p288 = scmp.lt.s32.totalorder %s23, 1
        %s289 = scalar_select %p288, %s23, 1
        %s290 = smul.addr %s289, 2
        %s291 = smul.addr %s290, 8
        %s292 = scalar_lea.vmem %s2, %s291
        // Predicated region
        $region41: #{hybrid_loss.1} parent=27 // pred_check
          %p293 = pneg %p105
        $region42: #{hybrid_loss.1} parent=27 // pred_check_branch
          %295 = sbr.rel (%p293) target = $region44
        $region43: #{hybrid_loss.1} parent=27 // pred_region
          _
        $region44: #{hybrid_loss.1} parent=27 // pred_fallthru
          _
      $region28: #{hybrid_loss.1} parent=5 // pred_fallthru
        _
      %p296 = scmp.le.s32.totalorder 2, %s14
      // Predicated region
      $region45: #{hybrid_loss.1} parent=5 // pred_check
        %p297 = pneg %p296
      $region46: #{hybrid_loss.1} parent=5 // pred_check_branch
        %299 = sbr.rel (%p297) target = $region48
      $region47: #{hybrid_loss.1} parent=5 // pred_region
        %s300 = ssub.s32 %s14, 2
        // Predicated region
        $region49: #{hybrid_loss.1} parent=47 // pred_check
          %p301 = pneg %p111
        $region50: #{hybrid_loss.1} parent=47 // pred_check_branch
          %303 = sbr.rel (%p301) target = $region52
        $region51: #{hybrid_loss.1} parent=47 // pred_region
          %p304 = scmp.lt.s32.totalorder %s25, 1
          %s305 = scalar_select %p304, %s25, 1
          %s306 = smul.addr %s305, 2
          %s307 = smul.addr %s306, 8
          %s308 = scalar_lea.vmem %s2, %s307
        $region52: #{hybrid_loss.1} parent=47 // pred_fallthru
          _
      $region48: #{hybrid_loss.1} parent=5 // pred_fallthru
        _
    $region6: #{hybrid_loss.1} parent=1 // loop_footer
      %s18 = sadd.s32 1, %s14
    $region7: #{hybrid_loss.1} parent=1 // loop_footer_branch
      %13 = sbr.rel target = $region3
    $region8: #{hybrid_loss.1} parent=1 // loop_exit
      _
    %309 = vsyncpa [#allocation3], 1
    %s310 = scalar_lea.sflag [#allocation3], 1
    %311 = vsyncpa %s310, 1
    %312 = vsyncpa [#allocation5], 1
    %s313 = scalar_lea.sflag [#allocation5], 1
    %314 = vsyncpa %s313, 1

</llo_original>
